<compile_context>
chip_gen: v7x
topology: tpu7x:2x2x1
jax: 0.10.0
libtpu: 0.0.40
codegen_flags: <defaults>
</compile_context>

<pallas_src>
import functools

import jax
import jax.numpy as jnp
from jax.experimental import pallas as pl
from jax.experimental.pallas import tpu as pltpu


def _round_up(v, m):
    return ((v + m - 1) // m) * m


def _dgcnn_kernel(x_ref, m_ref, gbias_ref, wfc_ref, bias_ref, o_ref):
    """Fused DGCNN forward for one batch tile.

    x_ref:     (TB, N*F)   bf16   lane-packed input tile
    m_ref:     (N*F, N*H)  bf16   fused (supports x BN-scale x cheb weights)
    gbias_ref: (1, N*H)    f32    folded BN-shift graph bias
    wfc_ref:   (N*H, Cp)   bf16   FC weight, columns padded to lane width
    bias_ref:  (1, Cp)     f32    FC bias (padded)
    o_ref:     (TB, Cp)    f32
    """
    # Graph conv (all K Chebyshev orders + BN scale pre-folded into m_ref).
    g = jnp.dot(x_ref[...], m_ref[...], preferred_element_type=jnp.float32)
    g = jnp.maximum(g + gbias_ref[...], 0.0)                     # BN shift + ReLU
    # FC head: single dense matmul, lane-dense output.
    out = jnp.dot(g.astype(wfc_ref.dtype), wfc_ref[...],
                  preferred_element_type=jnp.float32)
    o_ref[...] = (out + bias_ref[...]).astype(o_ref.dtype)


def _choose_batch_tile(B, max_batch_tile, min_split=16):
    """Pick (TB, Bp).  Small B -> single grid step; larger B -> >=2 chunks
    (8-aligned sublanes) so v7x's two TensorCores both get work."""
    if B <= min_split:
        return B, B
    tb = min(max_batch_tile, _round_up(pl.cdiv(B, 2), 8))
    bp = _round_up(B, tb)
    return tb, bp


def dgcnn_forward(x, A, cheb_w, fc_w3, fc_b, bn_gamma, bn_beta, bn_mean, bn_var,
                  eps=1e-5, max_batch_tile=1024):
    """Pallas DGCNN forward. x: (B, N, F) float32 -> (B, C) float32."""
    B, N, F = x.shape
    K, _, H = cheb_w.shape
    C = fc_w3.shape[-1]

    # ---- parameter glue (plain JAX, weights only) --------------------------
    # normalize_A: L = D^{-1/2} relu(A) D^{-1/2}
    A_relu = jax.nn.relu(A)
    d = jnp.sum(A_relu, axis=1)
    dinv = 1.0 / jnp.sqrt(d + 1e-10)
    L = dinv[:, None] * A_relu * dinv[None, :]
    # Chebyshev supports: S_0 = I, S_1 = L, S_k = S_{k-1} @ L
    sups = [jnp.eye(N, dtype=jnp.float32)]
    if K > 1:
        sups.append(L)
    for _ in range(2, K):
        sups.append(sups[-1] @ L)
    supports = jnp.stack(sups[:K], axis=0)                        # (K, N, N)

    # Fold BatchNorm1d (eval mode):  x_bn = x*scale + shift
    inv_std = 1.0 / jnp.sqrt(bn_var + eps)
    scale = bn_gamma * inv_std                                    # (F,)
    shift = bn_beta - bn_mean * scale                             # (F,)

    # Fused graph-conv operator:
    #   M[(j*F+f),(i*H+h)] = sum_k S_k[i,j] * scale[f] * W_k[f,h]
    M = jnp.einsum('kij,f,kfh->jfih', supports, scale, cheb_w)
    M = M.reshape(N * F, N * H).astype(jnp.bfloat16)              # (N*F, N*H)

    # Folded BN-shift graph bias:  gbias[i,h] = sum_k (S_k @ 1)[i] * (shift@W_k)[h]
    row_sums = supports.sum(axis=2)                               # (K, N)
    shift_w = jnp.einsum('f,kfh->kh', shift, cheb_w)              # (K, H)
    gbias = jnp.einsum('kn,kh->nh', row_sums, shift_w)            # (N, H)
    gbias_flat = gbias.reshape(1, N * H).astype(jnp.float32)

    # FC head: (N, H, C) -> (N*H, C), pad columns to a lane-dense multiple of 128.
    Cp = _round_up(C, 128)
    wfc = fc_w3.reshape(N * H, C).astype(jnp.float32)
    wfc = jnp.pad(wfc, ((0, 0), (0, Cp - C))).astype(jnp.bfloat16)    # (N*H, Cp)
    bias2 = jnp.pad(fc_b.reshape(1, C).astype(jnp.float32),
                    ((0, 0), (0, Cp - C)))                            # (1, Cp)

    # ---- batch tiling: lane-packed x, samples on the sublane axis ----------
    TB, Bp = _choose_batch_tile(B, max_batch_tile)
    x2d = x.reshape(B, N * F).astype(jnp.bfloat16)                # lane-packed
    if Bp != B:
        x2d = jnp.pad(x2d, ((0, Bp - B), (0, 0)))
    grid = Bp // TB

    out = pl.pallas_call(
        _dgcnn_kernel,
        out_shape=jax.ShapeDtypeStruct((Bp, Cp), jnp.float32),
        grid_spec=pltpu.PrefetchScalarGridSpec(
            num_scalar_prefetch=0,
            grid=(grid,),
            in_specs=[
                pl.BlockSpec((TB, N * F), lambda b: (b, 0)),      # x (batch tile)
                pl.BlockSpec((N * F, N * H), lambda b: (0, 0)),   # fused conv operator
                pl.BlockSpec((1, N * H), lambda b: (0, 0)),       # graph bias (BN shift)
                pl.BlockSpec((N * H, Cp), lambda b: (0, 0)),      # fc weight
                pl.BlockSpec((1, Cp), lambda b: (0, 0)),          # fc bias
            ],
            out_specs=pl.BlockSpec((TB, Cp), lambda b: (b, 0)),
        ),
        compiler_params=pltpu.CompilerParams(
            dimension_semantics=("parallel",)),
    )(x2d, M, gbias_flat, wfc, bias2)
    return out[:B, :C]


def dgcnn_reference(x, A, cheb_w, fc_w3, fc_b, bn_gamma, bn_beta, bn_mean, bn_var,
                    eps=1e-5):
    """Pure-JAX f32 reference for correctness check."""
    B, N, F = x.shape
    K, _, H = cheb_w.shape
    C = fc_w3.shape[-1]
    A_relu = jax.nn.relu(A)
    d = jnp.sum(A_relu, axis=1)
    dinv = 1.0 / jnp.sqrt(d + 1e-10)
    L = dinv[:, None] * A_relu * dinv[None, :]
    sups = [jnp.eye(N, dtype=jnp.float32)]
    if K > 1:
        sups.append(L)
    for _ in range(2, K):
        sups.append(sups[-1] @ L)
    inv_std = 1.0 / jnp.sqrt(bn_var + eps)
    xb = (x - bn_mean[None, None, :]) * inv_std[None, None, :] * \
        bn_gamma[None, None, :] + bn_beta[None, None, :]
    acc = jnp.zeros((B, N, H), dtype=jnp.float32)
    for k in range(K):
        acc = acc + jnp.einsum('ij,bjf,fh->bih', sups[k], xb, cheb_w[k])
    h = jnp.maximum(acc, 0.0)
    return h.reshape(B, N * H) @ fc_w3.reshape(N * H, C) + fc_b[None, :]


if __name__ == "__main__":
    # Small hyper-parameters consistent with DGCNN_Model.__init__
    num_channels = 2
    num_wavelets_per_chan = 4
    num_nodes = num_channels * num_wavelets_per_chan             # N = 8
    num_features_per_node = 4                                    # F
    num_graph_conv_layers = 2                                    # K
    num_hidden_nodes = 32                                        # H
    num_classes = 3                                              # C
    batch = 2

    key = jax.random.PRNGKey(0)
    ks = jax.random.split(key, 8)

    # deterministic parameter init (synthetic, xavier-ish scales)
    A = jax.random.normal(ks[0], (num_nodes, num_nodes), jnp.float32) * 0.5
    cheb_w = jax.random.normal(
        ks[1], (num_graph_conv_layers, num_features_per_node, num_hidden_nodes),
        jnp.float32) * (1.0 / jnp.sqrt(num_features_per_node))
    fc_w3 = jax.random.normal(
        ks[2], (num_nodes, num_hidden_nodes, num_classes), jnp.float32) * \
        (1.0 / jnp.sqrt(num_nodes * num_hidden_nodes))
    fc_b = jax.random.normal(ks[3], (num_classes,), jnp.float32) * 0.1
    bn_gamma = 1.0 + 0.1 * jax.random.normal(ks[4], (num_features_per_node,), jnp.float32)
    bn_beta = 0.1 * jax.random.normal(ks[5], (num_features_per_node,), jnp.float32)
    bn_mean = 0.05 * jax.random.normal(ks[6], (num_features_per_node,), jnp.float32)
    bn_var = jnp.abs(1.0 + 0.1 * jax.random.normal(ks[7], (num_features_per_node,),
                                                   jnp.float32))

    # forward input X: (batch, num_nodes, num_features_per_node)
    x = jax.random.normal(jax.random.PRNGKey(42),
                          (batch, num_nodes, num_features_per_node), jnp.float32)

    out = dgcnn_forward(x, A, cheb_w, fc_w3, fc_b, bn_gamma, bn_beta, bn_mean, bn_var)
    out = jax.block_until_ready(out)

    ref = dgcnn_reference(x, A, cheb_w, fc_w3, fc_b, bn_gamma, bn_beta, bn_mean, bn_var)
    assert out.shape == (batch, num_classes)
    # bf16 MXU operands with f32 accumulation -> compare to f32 reference
    # with a correspondingly looser tolerance.
    assert jnp.allclose(out, ref, atol=5e-2, rtol=5e-2), (out, ref)

    # Also exercise the multi-tile (grid >= 2) path with a larger batch.
    x_big = jax.random.normal(jax.random.PRNGKey(7),
                              (64, num_nodes, num_features_per_node), jnp.float32)
    out_big = jax.block_until_ready(
        dgcnn_forward(x_big, A, cheb_w, fc_w3, fc_b,
                      bn_gamma, bn_beta, bn_mean, bn_var))
    ref_big = dgcnn_reference(x_big, A, cheb_w, fc_w3, fc_b,
                              bn_gamma, bn_beta, bn_mean, bn_var)
    assert out_big.shape == (64, num_classes)
    assert jnp.allclose(out_big, ref_big, atol=5e-2, rtol=5e-2)

    print("KERNEL_OK")
</pallas_src>

<mosaic_0001>
module attributes {stable_mosaic.version = 11 : i64} {
  func.func @_dgcnn_kernel(%arg0: i32, %arg1: memref<2x32xbf16, #tpu.memory_space<vmem>>, %arg2: memref<32x256xbf16, #tpu.memory_space<vmem>>, %arg3: memref<1x256xf32, #tpu.memory_space<vmem>>, %arg4: memref<256x128xbf16, #tpu.memory_space<vmem>>, %arg5: memref<1x128xf32, #tpu.memory_space<vmem>>, %arg6: memref<2x128xf32, #tpu.memory_space<vmem>>) attributes {dimension_semantics = [#tpu.dimension_semantics<parallel>], iteration_bounds = array<i64: 1>, scalar_prefetch = 0 : i64, scratch_operands = 0 : i64, tpu.core_type = #tpu.core_type<tc>, window_params = [{transform_indices = @transform_0, window_bounds = array<i64: 2, 32>}, {pipeline_mode = #tpu.pipeline_mode<synchronous>, transform_indices = @transform_1, window_bounds = array<i64: 32, 256>}, {pipeline_mode = #tpu.pipeline_mode<synchronous>, transform_indices = @transform_2, window_bounds = array<i64: 1, 256>}, {pipeline_mode = #tpu.pipeline_mode<synchronous>, transform_indices = @transform_3, window_bounds = array<i64: 256, 128>}, {pipeline_mode = #tpu.pipeline_mode<synchronous>, transform_indices = @transform_4, window_bounds = array<i64: 1, 128>}, {transform_indices = @transform_5, window_bounds = array<i64: 2, 128>}]} {
    %c0 = arith.constant 0 : index
    %c0_0 = arith.constant 0 : index
    %0 = vector.load %arg1[%c0, %c0_0] : memref<2x32xbf16, #tpu.memory_space<vmem>>, vector<2x32xbf16>
    %c0_1 = arith.constant 0 : index
    %c0_2 = arith.constant 0 : index
    %1 = vector.load %arg2[%c0_1, %c0_2] : memref<32x256xbf16, #tpu.memory_space<vmem>>, vector<32x256xbf16>
    %cst = arith.constant dense<0.000000e+00> : vector<2x256xf32>
    %2 = tpu.matmul %0, %1, %cst {dimension_numbers = #tpu.dot_dimension_numbers<[1], [0], [0], [1], [0, 0, 1, 1], [], []>} : vector<2x32xbf16>, vector<32x256xbf16>, vector<2x256xf32> -> vector<2x256xf32>
    %c0_3 = arith.constant 0 : index
    %c0_4 = arith.constant 0 : index
    %3 = vector.load %arg3[%c0_3, %c0_4] : memref<1x256xf32, #tpu.memory_space<vmem>>, vector<1x256xf32>
    %4 = vector.broadcast %3 : vector<1x256xf32> to vector<2x256xf32>
    %5 = arith.addf %2, %4 : vector<2x256xf32>
    %cst_5 = arith.constant 0.000000e+00 : f32
    %6 = vector.broadcast %cst_5 : f32 to vector<2x256xf32>
    %7 = arith.maximumf %5, %6 : vector<2x256xf32>
    %8 = arith.truncf %7 : vector<2x256xf32> to vector<2x256xbf16>
    %c0_6 = arith.constant 0 : index
    %c0_7 = arith.constant 0 : index
    %9 = vector.load %arg4[%c0_6, %c0_7] : memref<256x128xbf16, #tpu.memory_space<vmem>>, vector<256x128xbf16>
    %cst_8 = arith.constant dense<0.000000e+00> : vector<2x128xf32>
    %10 = tpu.matmul %8, %9, %cst_8 {dimension_numbers = #tpu.dot_dimension_numbers<[1], [0], [0], [1], [0, 0, 1, 1], [], []>} : vector<2x256xbf16>, vector<256x128xbf16>, vector<2x128xf32> -> vector<2x128xf32>
    %c0_9 = arith.constant 0 : index
    %c0_10 = arith.constant 0 : index
    %11 = vector.load %arg5[%c0_9, %c0_10] : memref<1x128xf32, #tpu.memory_space<vmem>>, vector<1x128xf32>
    %12 = vector.broadcast %11 : vector<1x128xf32> to vector<2x128xf32>
    %13 = arith.addf %10, %12 : vector<2x128xf32>
    %c0_11 = arith.constant 0 : index
    %c0_12 = arith.constant 0 : index
    %14 = vector.load %arg6[%c0_11, %c0_12] : memref<2x128xf32, #tpu.memory_space<vmem>>, vector<2x128xf32>
    tpu.vector_store %arg6[%c0_11, %c0_12], %13 {strides = array<i32>} : memref<2x128xf32, #tpu.memory_space<vmem>>, vector<2x128xf32>,
    return
  }
  func.func @transform_0(%arg0: i32) -> (i32, i32) {
    %c0_i32 = arith.constant 0 : i32
    %c0_i32_0 = arith.constant 0 : i32
    return %arg0, %c0_i32 : i32, i32
  }
  func.func @transform_1(%arg0: i32) -> (i32, i32) {
    %c0_i32 = arith.constant 0 : i32
    %c0_i32_0 = arith.constant 0 : i32
    %c0_i32_1 = arith.constant 0 : i32
    return %c0_i32, %c0_i32_0 : i32, i32
  }
  func.func @transform_2(%arg0: i32) -> (i32, i32) {
    %c0_i32 = arith.constant 0 : i32
    %c0_i32_0 = arith.constant 0 : i32
    %c0_i32_1 = arith.constant 0 : i32
    return %c0_i32, %c0_i32_0 : i32, i32
  }
  func.func @transform_3(%arg0: i32) -> (i32, i32) {
    %c0_i32 = arith.constant 0 : i32
    %c0_i32_0 = arith.constant 0 : i32
    %c0_i32_1 = arith.constant 0 : i32
    return %c0_i32, %c0_i32_0 : i32, i32
  }
  func.func @transform_4(%arg0: i32) -> (i32, i32) {
    %c0_i32 = arith.constant 0 : i32
    %c0_i32_0 = arith.constant 0 : i32
    %c0_i32_1 = arith.constant 0 : i32
    return %c0_i32, %c0_i32_0 : i32, i32
  }
  func.func @transform_5(%arg0: i32) -> (i32, i32) {
    %c0_i32 = arith.constant 0 : i32
    %c0_i32_0 = arith.constant 0 : i32
    return %arg0, %c0_i32 : i32, i32
  }
}

</mosaic_0001>

<llo_original>
// kernel: tpu_custom_call.1
$region0: #{tpu_custom_call.1}
  #allocation0 [shape = 'u32[]', space=smem, size = 0x4, offset = 0x4, fixed_abs, tag = 'smem constant byte address 0x4 - core index']
  #allocation1 [shape = 'u32[144,128]{1,0:T(1,128)}', space=vmem, size = 0x12000, scoped, tag = 'internal scratch']
  %s0 = inlined_call_operand.hbm [shape: bf16[2,32], index: 0, kind: input, shape index: {}]
  %s1 = inlined_call_operand.hbm [shape: bf16[32,256], index: 1, kind: input, shape index: {}]
  %s2 = inlined_call_operand.vmem [shape: f32[1,256], index: 2, kind: input, shape index: {}]
  %s3 = inlined_call_operand.hbm [shape: bf16[256,128], index: 3, kind: input, shape index: {}]
  %s4 = inlined_call_operand.vmem [shape: f32[1,128], index: 4, kind: input, shape index: {}]
  %s5 = inlined_call_operand.hbm [shape: f32[2,128], index: 5, kind: output, shape index: {}]
  %s6 = sld [smem:[#allocation0]]
  $region42: #{tpu_custom_call.1} parent=0
    _
  %s8 = ssub.s32 1, %s6
  %s9 = scalar_select 0, %s8, %s6
  $region1: #{tpu_custom_call.1} parent=0
    #allocation2 [shape = 'u8[512]{0}', space=vmem, size = 0x400, scoped, tag = 'input window, operand 0, single buffered']
    #allocation3 [shape = 's32[1]{0}', space=sflag, size = 0x4, scoped, tag = 'scoped memory for tpu_custom_call.1']
    #allocation4 [shape = 's32[1]{0}', space=sflag, size = 0x4, scoped, tag = 'scoped memory for tpu_custom_call.1']
    #allocation5 [shape = 'u8[16384]{0}', space=vmem, size = 0x4000, scoped, tag = 'input window, operand 1, single buffered']
    #allocation6 [shape = 's32[1]{0}', space=sflag, size = 0x4, scoped, tag = 'scoped memory for tpu_custom_call.1']
    #allocation7 [shape = 'u8[65536]{0}', space=vmem, size = 0x10000, scoped, tag = 'input window, operand 3, single buffered']
    #allocation8 [shape = 'u8[1024]{0}', space=vmem, size = 0x400, scoped, tag = 'output window, operand 0, single buffered']
    %10 = vsyncpa [#allocation3], 0
    %11 = vsyncpa [#allocation6], 0
    %12 = vsyncpa [#allocation4], 0
    // Predicated region
    $region2: #{tpu_custom_call.1} parent=1 // pred_check
      _
    $region3: #{tpu_custom_call.1} parent=1 // pred_check_branch
      %14 = sbr.rel (0) target = $region5
    $region4: #{tpu_custom_call.1} parent=1 // pred_region
      %s16 = ssub.s32 16, 16
      %17 = vsyncadd [#allocation3], %s16
      %s19 = sshll.u32 [#allocation2], 4
      %s20 = int_to_ptr.vmem [resolvable:$true] %s19
      %22 = dma.hbm_to_vmem [thread:$0]  %s0, 16, %s20, [#allocation3]
    $region5: #{tpu_custom_call.1} parent=1 // pred_fallthru
      _
    // Predicated region
    $region6: #{tpu_custom_call.1} parent=1 // pred_check
      _
    $region7: #{tpu_custom_call.1} parent=1 // pred_check_branch
      %24 = sbr.rel (0) target = $region9
    $region8: #{tpu_custom_call.1} parent=1 // pred_region
      %s26 = ssub.s32 512, 512
      %27 = vsyncadd [#allocation6], %s26
      %s28 = sshll.u32 [#allocation5], 4
      %s29 = int_to_ptr.vmem [resolvable:$true] %s28
      %34 = dma.hbm_to_vmem [thread:$0]  %s1, 512, %s29, [#allocation6], 128, 128, 8
    $region9: #{tpu_custom_call.1} parent=1 // pred_fallthru
      _
    // Predicated region
    $region10: #{tpu_custom_call.1} parent=1 // pred_check
      _
    $region11: #{tpu_custom_call.1} parent=1 // pred_check_branch
      %36 = sbr.rel (0) target = $region13
    $region12: #{tpu_custom_call.1} parent=1 // pred_region
      _
    $region13: #{tpu_custom_call.1} parent=1 // pred_fallthru
      _
    // Predicated region
    $region14: #{tpu_custom_call.1} parent=1 // pred_check
      _
    $region15: #{tpu_custom_call.1} parent=1 // pred_check_branch
      %38 = sbr.rel (0) target = $region17
    $region16: #{tpu_custom_call.1} parent=1 // pred_region
      %s40 = ssub.s32 2048, 2048
      %41 = vsyncadd [#allocation6], %s40
      %s42 = sshll.u32 [#allocation7], 4
      %s43 = int_to_ptr.vmem [resolvable:$true] %s42
      %48 = dma.hbm_to_vmem [thread:$0]  %s3, 2048, %s43, [#allocation6], 64, 64, 4
    $region17: #{tpu_custom_call.1} parent=1 // pred_fallthru
      _
    // Predicated region
    $region18: #{tpu_custom_call.1} parent=1 // pred_check
      _
    $region19: #{tpu_custom_call.1} parent=1 // pred_check_branch
      %50 = sbr.rel (0) target = $region21
    $region20: #{tpu_custom_call.1} parent=1 // pred_region
      _
    $region21: #{tpu_custom_call.1} parent=1 // pred_fallthru
      _
    // Predicated region
    $region22: #{tpu_custom_call.1} parent=1 // pred_check
      _
    $region23: #{tpu_custom_call.1} parent=1 // pred_check_branch
      %52 = sbr.rel (0) target = $region25
    $region24: #{tpu_custom_call.1} parent=1 // pred_region
      %53 = dma.done [#allocation3], 16
    $region25: #{tpu_custom_call.1} parent=1 // pred_fallthru
      _
    // Predicated region
    $region26: #{tpu_custom_call.1} parent=1 // pred_check
      _
    $region27: #{tpu_custom_call.1} parent=1 // pred_check_branch
      %55 = sbr.rel (0) target = $region29
    $region28: #{tpu_custom_call.1} parent=1 // pred_region
      %56 = dma.done [#allocation6], 512
    $region29: #{tpu_custom_call.1} parent=1 // pred_fallthru
      _
    // Predicated region
    $region30: #{tpu_custom_call.1} parent=1 // pred_check
      _
    $region31: #{tpu_custom_call.1} parent=1 // pred_check_branch
      %58 = sbr.rel (0) target = $region33
    $region32: #{tpu_custom_call.1} parent=1 // pred_region
      %59 = dma.done [#allocation6], 2048
    $region33: #{tpu_custom_call.1} parent=1 // pred_fallthru
      _
    %v61 = vld [vmem:[#allocation2] sm:$0x1]
    %v62 = vld [vmem:[#allocation5] sm:$0xff]
    %v63 = vld [vmem:[#allocation5 + $0x8] sm:$0xff]
    %v64 = vld [vmem:[#allocation5 + $0x10] sm:$0xff]
    %v65 = vld [vmem:[#allocation5 + $0x18] sm:$0xff]
    %v66 = vld [vmem:[%s2] sm:$0x3]
    %v68 = vlaneseq
    %v69 = vshrl.u32 %v68, 7
    %v70 = vsub.s32 0, %v69
    %v71 = vrot.slane %v66, %v70
    %v72 = vlaneseq
    %v73 = vshrl.u32 %v72, 7
    %v74 = vsub.s32 1, %v73
    %v75 = vrot.slane %v66, %v74
    %v82 = vunpack.c.l.b16 %v62
    %v83 = vunpack.c.h.b16 %v62
    %v84 = vunpack.c.l.b16 %v63
    %v85 = vunpack.c.h.b16 %v63
    %v86 = vunpack.c.l.b16 %v64
    %v87 = vunpack.c.h.b16 %v64
    %v88 = vunpack.c.l.b16 %v65
    %v89 = vunpack.c.h.b16 %v65
    %v90 = vpack.c.b16 %v84, %v82
    %v91 = vpack.c.b16 %v85, %v83
    %v92 = vpack.c.b16 %v88, %v86
    %v93 = vpack.c.b16 %v89, %v87
    %vm98 = vcmask 261120
    %v100 = vsel %vm98, %v61, 0
    %102 = vmatprep.subr.bf16.mxu0 %v91
    %103 = vmatpush1.bf16.msra.mxu0 %v90
    %104 = vmatprep.subr.bf16.mxu0 %v93
    %105 = vmatpush1.bf16.msra.mxu0 %v92
    %106 = vmatprep.subr.bf16.mxu0 0
    %107 = vmatpush1.bf16.msra.mxu0 0
    %108 = vmatprep.subr.bf16.mxu0 0
    %109 = vmatpush1.bf16.msra.mxu0 0
    %110 = vmatprep.subr.bf16.mxu0 0
    %111 = vmatpush1.bf16.msra.mxu0 0
    %112 = vmatprep.subr.bf16.mxu0 0
    %113 = vmatpush1.bf16.msra.mxu0 0
    %114 = vmatprep.subr.bf16.mxu0 0
    %115 = vmatpush1.bf16.msra.mxu0 0
    %116 = vmatprep.subr.bf16.mxu0 0
    %117 = vmatpush1.bf16.msra.mxu0 0
    %118 = vmatprep.subr.bf16.mxu0 0
    %119 = vmatpush1.bf16.msra.mxu0 0
    %120 = vmatprep.subr.bf16.mxu0 0
    %121 = vmatpush1.bf16.msra.mxu0 0
    %122 = vmatprep.subr.bf16.mxu0 0
    %123 = vmatpush1.bf16.msra.mxu0 0
    %124 = vmatprep.subr.bf16.mxu0 0
    %125 = vmatpush1.bf16.msra.mxu0 0
    %126 = vmatprep.subr.bf16.mxu0 0
    %127 = vmatpush1.bf16.msra.mxu0 0
    %128 = vmatprep.subr.bf16.mxu0 0
    %129 = vmatpush1.bf16.msra.mxu0 0
    %130 = vmatprep.subr.bf16.mxu0 0
    %131 = vmatpush1.bf16.msra.mxu0 0
    %132 = vmatprep.subr.bf16.mxu0 0
    %133 = vmatpush1.bf16.msra.mxu0 0
    %134 = vmatprep.mubr.bf16.mxu0 0
    %135 = vmatmul.mubr.bf16.gmra.mrb[0].mxu0 %v100
    %v136 = vpop.f32.mrb[0].mxu0
    %v137 = vadd.f32 %v71, %v136
    %v138 = vpop.f32.mrb[0].mxu0
    %v139 = vadd.f32 %v75, %v138
    %v140 = vpop.f32.mrb[0].mxu0
    %v141 = vpop.f32.mrb[0].mxu0
    %142 = vdwg.mxu0
    %v143 = vmax.f32 %v137, 0.0
    %v144 = vmax.f32 %v139, 0.0
    %v145 = vpack.c.bf16 %v143, %v143
    %v146 = vpack.c.bf16 %v144, %v144
    %v147 = vld [vmem:[#allocation7] sm:$0xf]
    %v148 = vld [vmem:[#allocation7 + $0x4] sm:$0xf]
    %v149 = vld [vmem:[#allocation7 + $0x8] sm:$0xf]
    %v150 = vld [vmem:[#allocation7 + $0xc] sm:$0xf]
    %v151 = vld [vmem:[#allocation7 + $0x10] sm:$0xf]
    %v152 = vld [vmem:[#allocation7 + $0x14] sm:$0xf]
    %v153 = vld [vmem:[#allocation7 + $0x18] sm:$0xf]
    %v154 = vld [vmem:[#allocation7 + $0x1c] sm:$0xf]
    %v155 = vld [vmem:[#allocation7 + $0x20] sm:$0xf]
    %v156 = vld [vmem:[#allocation7 + $0x24] sm:$0xf]
    %v157 = vld [vmem:[#allocation7 + $0x28] sm:$0xf]
    %v158 = vld [vmem:[#allocation7 + $0x2c] sm:$0xf]
    %v159 = vld [vmem:[#allocation7 + $0x30] sm:$0xf]
    %v160 = vld [vmem:[#allocation7 + $0x34] sm:$0xf]
    %v161 = vld [vmem:[#allocation7 + $0x38] sm:$0xf]
    %v162 = vld [vmem:[#allocation7 + $0x3c] sm:$0xf]
    %v163 = vld [vmem:[#allocation7 + $0x40] sm:$0xf]
    %v164 = vld [vmem:[#allocation7 + $0x44] sm:$0xf]
    %v165 = vld [vmem:[#allocation7 + $0x48] sm:$0xf]
    %v166 = vld [vmem:[#allocation7 + $0x4c] sm:$0xf]
    %v167 = vld [vmem:[#allocation7 + $0x50] sm:$0xf]
    %v168 = vld [vmem:[#allocation7 + $0x54] sm:$0xf]
    %v169 = vld [vmem:[#allocation7 + $0x58] sm:$0xf]
    %v170 = vld [vmem:[#allocation7 + $0x5c] sm:$0xf]
    %v171 = vld [vmem:[#allocation7 + $0x60] sm:$0xf]
    %v172 = vld [vmem:[#allocation7 + $0x64] sm:$0xf]
    %v173 = vld [vmem:[#allocation7 + $0x68] sm:$0xf]
    %v174 = vld [vmem:[#allocation7 + $0x6c] sm:$0xf]
    %v175 = vld [vmem:[#allocation7 + $0x70] sm:$0xf]
    %v176 = vld [vmem:[#allocation7 + $0x74] sm:$0xf]
    %v177 = vld [vmem:[#allocation7 + $0x78] sm:$0xf]
    %v178 = vld [vmem:[#allocation7 + $0x7c] sm:$0xf]
    %v179 = vld [vmem:[%s4] sm:$0x1]
    %v181 = vlaneseq
    %v182 = vshrl.u32 %v181, 7
    %v183 = vsub.s32 0, %v182
    %v184 = vrot.slane %v179, %v183
    %v218 = vunpack.c.l.b16 %v147
    %v219 = vunpack.c.l.b16 %v148
    %v220 = vunpack.c.l.b16 %v149
    %v221 = vunpack.c.l.b16 %v150
    %v222 = vunpack.c.l.b16 %v151
    %v223 = vunpack.c.l.b16 %v152
    %v224 = vunpack.c.l.b16 %v153
    %v225 = vunpack.c.l.b16 %v154
    %v226 = vunpack.c.l.b16 %v155
    %v227 = vunpack.c.l.b16 %v156
    %v228 = vunpack.c.l.b16 %v157
    %v229 = vunpack.c.l.b16 %v158
    %v230 = vunpack.c.l.b16 %v159
    %v231 = vunpack.c.l.b16 %v160
    %v232 = vunpack.c.l.b16 %v161
    %v233 = vunpack.c.l.b16 %v162
    %v234 = vunpack.c.l.b16 %v163
    %v235 = vunpack.c.l.b16 %v164
    %v236 = vunpack.c.l.b16 %v165
    %v237 = vunpack.c.l.b16 %v166
    %v238 = vunpack.c.l.b16 %v167
    %v239 = vunpack.c.l.b16 %v168
    %v240 = vunpack.c.l.b16 %v169
    %v241 = vunpack.c.l.b16 %v170
    %v242 = vunpack.c.l.b16 %v171
    %v243 = vunpack.c.l.b16 %v172
    %v244 = vunpack.c.l.b16 %v173
    %v245 = vunpack.c.l.b16 %v174
    %v246 = vunpack.c.l.b16 %v175
    %v247 = vunpack.c.l.b16 %v176
    %v248 = vunpack.c.l.b16 %v177
    %v249 = vunpack.c.l.b16 %v178
    %v250 = vpack.c.b16 %v219, %v218
    %v251 = vpack.c.b16 %v221, %v220
    %v252 = vpack.c.b16 %v223, %v222
    %v253 = vpack.c.b16 %v225, %v224
    %v254 = vpack.c.b16 %v227, %v226
    %v255 = vpack.c.b16 %v229, %v228
    %v256 = vpack.c.b16 %v231, %v230
    %v257 = vpack.c.b16 %v233, %v232
    %v258 = vpack.c.b16 %v235, %v234
    %v259 = vpack.c.b16 %v237, %v236
    %v260 = vpack.c.b16 %v239, %v238
    %v261 = vpack.c.b16 %v241, %v240
    %v262 = vpack.c.b16 %v243, %v242
    %v263 = vpack.c.b16 %v245, %v244
    %v264 = vpack.c.b16 %v247, %v246
    %v265 = vpack.c.b16 %v249, %v248
    %282 = vmatprep.subr.bf16.mxu0 0
    %283 = vmatpush1.bf16.msra.mxu0 %v250
    %284 = vmatprep.subr.bf16.mxu0 0
    %285 = vmatpush1.bf16.msra.mxu0 %v251
    %286 = vmatprep.subr.bf16.mxu0 0
    %287 = vmatpush1.bf16.msra.mxu0 %v252
    %288 = vmatprep.subr.bf16.mxu0 0
    %289 = vmatpush1.bf16.msra.mxu0 %v253
    %290 = vmatprep.subr.bf16.mxu0 0
    %291 = vmatpush1.bf16.msra.mxu0 %v254
    %292 = vmatprep.subr.bf16.mxu0 0
    %293 = vmatpush1.bf16.msra.mxu0 %v255
    %294 = vmatprep.subr.bf16.mxu0 0
    %295 = vmatpush1.bf16.msra.mxu0 %v256
    %296 = vmatprep.subr.bf16.mxu0 0
    %297 = vmatpush1.bf16.msra.mxu0 %v257
    %298 = vmatprep.subr.bf16.mxu0 0
    %299 = vmatpush1.bf16.msra.mxu0 %v258
    %300 = vmatprep.subr.bf16.mxu0 0
    %301 = vmatpush1.bf16.msra.mxu0 %v259
    %302 = vmatprep.subr.bf16.mxu0 0
    %303 = vmatpush1.bf16.msra.mxu0 %v260
    %304 = vmatprep.subr.bf16.mxu0 0
    %305 = vmatpush1.bf16.msra.mxu0 %v261
    %306 = vmatprep.subr.bf16.mxu0 0
    %307 = vmatpush1.bf16.msra.mxu0 %v262
    %308 = vmatprep.subr.bf16.mxu0 0
    %309 = vmatpush1.bf16.msra.mxu0 %v263
    %310 = vmatprep.subr.bf16.mxu0 0
    %311 = vmatpush1.bf16.msra.mxu0 %v264
    %312 = vmatprep.subr.bf16.mxu0 0
    %313 = vmatpush1.bf16.msra.mxu0 %v265
    %314 = vmatprep.mubr.bf16.mxu0 %v146
    %315 = vmatmul.mubr.bf16.gmra.mrb[0].mxu0 %v145
    %v316 = vpop.f32.mrb[0].mxu0
    %v317 = vadd.f32 %v184, %v316
    %v318 = vpop.f32.mrb[0].mxu0
    %v319 = vpop.f32.mrb[0].mxu0
    %v320 = vpop.f32.mrb[0].mxu0
    %321 = vdwg.mxu0
    %322 = vst [vmem:[#allocation8] sm:$0x3] %v317
    // Predicated region
    $region34: #{tpu_custom_call.1} parent=1 // pred_check
      _
    $region35: #{tpu_custom_call.1} parent=1 // pred_check_branch
      %324 = sbr.rel (0) target = $region37
    $region36: #{tpu_custom_call.1} parent=1 // pred_region
      %s326 = ssub.s32 32, 32
      %327 = vsyncadd [#allocation4], %s326
      %s329 = sshll.u32 [#allocation8], 4
      %s330 = int_to_ptr.vmem [resolvable:$true] %s329
      %332 = dma.vmem_to_hbm [thread:$0]  %s330, 32, %s5, [#allocation4]
    $region37: #{tpu_custom_call.1} parent=1 // pred_fallthru
      _
    // Predicated region
    $region38: #{tpu_custom_call.1} parent=1 // pred_check
      _
    $region39: #{tpu_custom_call.1} parent=1 // pred_check_branch
      %334 = sbr.rel (0) target = $region41
    $region40: #{tpu_custom_call.1} parent=1 // pred_region
      %335 = dma.done [#allocation4], 32
    $region41: #{tpu_custom_call.1} parent=1 // pred_fallthru
      _
    %336 = vsyncpa [#allocation3], 1
    %337 = vsyncpa [#allocation6], 1
    %338 = vsyncpa [#allocation4], 1

</llo_original>
